<compile_context>
chip_gen: v7x
topology: tpu7x:2x2x1
jax: 0.10.0
libtpu: 0.0.40
codegen_flags: <defaults>
</compile_context>

<pallas_src>
import functools

import jax
import jax.numpy as jnp
from jax import lax
from jax.experimental import pallas as pl
from jax.experimental.pallas import tpu as pltpu


def _cdiv(a, b):
    return (a + b - 1) // b


def _round_up(a, b):
    return _cdiv(a, b) * b


def _num_tensorcores():
    """Best-effort TensorCore-per-chip count; defaults to 1 (v5e/v6e)."""
    try:
        info = pltpu.get_tpu_info()
        for name in ("num_cores", "core_count", "num_tensorcores",
                     "tensorcores_per_chip", "num_tensor_cores"):
            v = getattr(info, name, None)
            if isinstance(v, int) and v in (1, 2):
                return v
    except Exception:
        pass
    return 1


def _vmem_limit_bytes(need_bytes):
    """Scoped-VMEM limit: generous but with headroom below physical VMEM."""
    cap = 48 * 2**20                      # safe on v5e/v6e (128 MiB) and v7x (64 MiB)
    try:
        info = pltpu.get_tpu_info()
        phys = getattr(info, "vmem_capacity_bytes", None)
        if phys:
            cap = int(phys) * 3 // 4
    except Exception:
        pass
    return int(min(max(32 * 2**20, 2 * int(need_bytes)), cap))


# --------------------------------------------------------------------------
# Fast lane-dense kernel: planes flattened to (NC, M), M = H*W, M % 128 == 0.
# --------------------------------------------------------------------------
def _grad_loss_flat_kernel(x_ref, out_h_ref, out_w_ref, masks_ref, *,
                           penalty, w, nc, planes_per_block, blocks_per_split,
                           total_blocks, mask_planes, need_guard):
    s = pl.program_id(0)          # core split (CORE_PARALLEL when >1 core)
    j = pl.program_id(1)          # block within split (sequential)

    @pl.when(j == 0)
    def _init():
        out_h_ref[0, 0] = jnp.float32(0.0)
        out_w_ref[0, 0] = jnp.float32(0.0)
        m = masks_ref.shape[1]
        col = lax.broadcasted_iota(jnp.int32, (1, m), 1)
        if (w & (w - 1)) == 0:                          # power-of-two W
            in_row = col & (w - 1)
        else:
            in_row = col % w
        masks_ref[0:1, :] = (col >= w).astype(jnp.float32)    # dH valid cols
        masks_ref[1:2, :] = (in_row != 0).astype(jnp.float32)  # dW valid cols

    blk = s * blocks_per_split + j

    def _compute():
        x = x_ref[...].astype(jnp.float32)              # (b, m)
        if mask_planes:
            b = x_ref.shape[0]
            row = lax.broadcasted_iota(jnp.int32, (b, 1), 0)
            x = jnp.where(blk * planes_per_block + row < nc, x, 0.0)

        mask_h = masks_ref[0:1, :]
        mask_w = masks_ref[1:2, :]
        # roll(x, k)[p] == x[p - k]  ->  forward differences.
        dh = (x - pltpu.roll(x, shift=w, axis=1)) * mask_h
        dw = (x - pltpu.roll(x, shift=1, axis=1)) * mask_w
        if penalty == "L2":
            dh = dh * dh
            dw = dw * dw
        else:
            dh = jnp.abs(dh)
            dw = jnp.abs(dw)
        out_h_ref[0, 0] += jnp.sum(dh)
        out_w_ref[0, 0] += jnp.sum(dw)

    if need_guard:
        pl.when(blk < total_blocks)(_compute)   # skip fully grid-padded steps
    else:
        _compute()


def _flat_path(x2, w, penalty, target_block_bytes):
    nc, m = x2.shape
    itemsize = x2.dtype.itemsize

    ppb = max(8, (target_block_bytes // (m * itemsize)) // 8 * 8)
    ppb = min(ppb, _round_up(nc, 8))

    total_blocks = _cdiv(nc, ppb)
    num_splits = max(1, min(_num_tensorcores(), total_blocks))
    blocks_per_split = _cdiv(total_blocks, num_splits)
    grid = (num_splits, blocks_per_split)

    need_guard = num_splits * blocks_per_split > total_blocks
    mask_planes = total_blocks * ppb > nc        # last block has padded planes

    if need_guard:
        def in_map(s, j):
            return (jnp.minimum(s * blocks_per_split + j, total_blocks - 1), 0)
    else:
        def in_map(s, j):
            return (s * blocks_per_split + j, 0)

    kernel = functools.partial(
        _grad_loss_flat_kernel, penalty=penalty, w=w, nc=nc,
        planes_per_block=ppb, blocks_per_split=blocks_per_split,
        total_blocks=total_blocks, mask_planes=mask_planes,
        need_guard=need_guard)

    block_bytes = ppb * m * itemsize
    vmem_need = 2 * block_bytes + 2 * m * 4 + (1 << 20)
    dim0_sem = pltpu.CORE_PARALLEL if num_splits > 1 else pltpu.ARBITRARY

    out_h, out_w = pl.pallas_call(
        kernel,
        grid=grid,
        in_specs=[pl.BlockSpec((ppb, m), in_map)],
        out_specs=[
            pl.BlockSpec((1, 1), lambda s, j: (s, 0),
                         memory_space=pltpu.MemorySpace.SMEM),
            pl.BlockSpec((1, 1), lambda s, j: (s, 0),
                         memory_space=pltpu.MemorySpace.SMEM),
        ],
        out_shape=(
            jax.ShapeDtypeStruct((num_splits, 1), jnp.float32),
            jax.ShapeDtypeStruct((num_splits, 1), jnp.float32),
        ),
        scratch_shapes=[pltpu.VMEM((2, m), jnp.float32)],   # cached lane masks
        compiler_params=pltpu.CompilerParams(
            dimension_semantics=(dim0_sem, pltpu.ARBITRARY),
            vmem_limit_bytes=_vmem_limit_bytes(vmem_need)),
        cost_estimate=pl.CostEstimate(
            flops=6 * nc * m, transcendentals=0,
            bytes_accessed=nc * m * itemsize + 8 * num_splits),
    )(x2)
    return jnp.sum(out_h), jnp.sum(out_w)


# --------------------------------------------------------------------------
# Tiled fallback: (planes, h_tile, W) blocks.  Handles H*W % 128 != 0 and
# very large planes (intra-plane H tiling; dH seam corrected in the wrapper).
# --------------------------------------------------------------------------
def _grad_loss_tiled_kernel(x_ref, out_h_ref, out_w_ref, *, penalty, nc, h,
                            pb, ht, mask_planes, mask_rows):
    pi = pl.program_id(0)
    hi = pl.program_id(1)

    @pl.when(jnp.logical_and(pi == 0, hi == 0))
    def _():
        out_h_ref[0, 0] = jnp.float32(0.0)
        out_w_ref[0, 0] = jnp.float32(0.0)

    x = x_ref[...].astype(jnp.float32)                  # (pb, ht, W)
    if mask_planes:
        prow = lax.broadcasted_iota(jnp.int32, (pb, 1, 1), 0)
        x = jnp.where(pi * pb + prow < nc, x, 0.0)

    dh = x[:, 1:, :] - x[:, :-1, :]
    dw = x[:, :, 1:] - x[:, :, :-1]
    if penalty == "L2":
        dh = dh * dh
        dw = dw * dw
    else:
        dh = jnp.abs(dh)
        dw = jnp.abs(dw)
    if mask_rows:
        r = lax.broadcasted_iota(jnp.int32, (1, ht, 1), 1)
        grow = hi * ht + r
        dh = jnp.where(grow[:, 1:, :] < h, dh, 0.0)
        dw = jnp.where(grow < h, dw, 0.0)
    out_h_ref[0, 0] += jnp.sum(dh)
    out_w_ref[0, 0] += jnp.sum(dw)


def _tiled_path(x3, penalty, target_block_bytes):
    nc, h, w = x3.shape
    itemsize = x3.dtype.itemsize
    wp = _round_up(w, 128)                 # VMEM pads W to 128 lanes
    row_bytes = wp * itemsize
    plane_bytes = h * row_bytes

    if plane_bytes <= target_block_bytes:
        ht = h
        pb = max(1, min(target_block_bytes // plane_bytes, nc))
    else:
        pb = 1
        ht = max(8, (target_block_bytes // row_bytes) // 8 * 8)
        if ht >= h:
            ht = h
    nb_p = _cdiv(nc, pb)
    nb_h = _cdiv(h, ht)
    mask_planes = nb_p * pb > nc
    mask_rows = nb_h * ht > h

    kernel = functools.partial(_grad_loss_tiled_kernel, penalty=penalty,
                               nc=nc, h=h, pb=pb, ht=ht,
                               mask_planes=mask_planes, mask_rows=mask_rows)

    block_bytes = pb * ht * row_bytes
    out_h, out_w = pl.pallas_call(
        kernel,
        grid=(nb_p, nb_h),
        in_specs=[pl.BlockSpec((pb, ht, w), lambda i, j: (i, j, 0))],
        out_specs=[
            pl.BlockSpec((1, 1), lambda i, j: (0, 0),
                         memory_space=pltpu.MemorySpace.SMEM),
            pl.BlockSpec((1, 1), lambda i, j: (0, 0),
                         memory_space=pltpu.MemorySpace.SMEM),
        ],
        out_shape=(jax.ShapeDtypeStruct((1, 1), jnp.float32),
                   jax.ShapeDtypeStruct((1, 1), jnp.float32)),
        compiler_params=pltpu.CompilerParams(
            dimension_semantics=(pltpu.ARBITRARY, pltpu.ARBITRARY),
            vmem_limit_bytes=_vmem_limit_bytes(2 * block_bytes + (1 << 20))),
    )(x3)
    sum_h = out_h[0, 0]
    sum_w = out_w[0, 0]

    # dH pairs straddling h-tile boundaries (tiny: (nb_h-1) rows per plane).
    if nb_h > 1:
        k = nb_h - 1
        top = x3[:, ht::ht, :][:, :k, :].astype(jnp.float32)
        bot = x3[:, ht - 1::ht, :][:, :k, :].astype(jnp.float32)
        d = top - bot
        d = d * d if penalty == "L2" else jnp.abs(d)
        sum_h = sum_h + jnp.sum(d)
    return sum_h, sum_w


# --------------------------------------------------------------------------
# Public wrapper: equivalent of gradientLoss2d.forward for an NCHW input.
# --------------------------------------------------------------------------
def gradient_loss_2d(x, penalty="L1", reduction="mean",
                     target_block_bytes=8 * 2**20):
    n, c, h, w = x.shape
    nc = n * c
    m = h * w
    itemsize = x.dtype.itemsize

    flat_ok = (m % 128 == 0
               and 8 * m * itemsize <= 16 * 2**20   # minimum 8-plane block fits
               and m <= (1 << 20))                  # (2, m) f32 mask scratch small
    if flat_ok:
        sum_h, sum_w = _flat_path(x.reshape(nc, m), w, penalty,
                                  target_block_bytes)
    else:
        sum_h, sum_w = _tiled_path(x.reshape(nc, h, w), penalty,
                                   target_block_bytes)

    if reduction == "mean":
        mean_h = sum_h / (nc * (h - 1) * w)
        mean_w = sum_w / (nc * h * (w - 1))
        return (mean_h + mean_w) * 0.5
    return sum_h + sum_w


def _reference(x, penalty="L1", reduction="mean"):
    x = x.astype(jnp.float32)
    dh = jnp.abs(x[:, :, 1:, :] - x[:, :, :-1, :])
    dw = jnp.abs(x[:, :, :, 1:] - x[:, :, :, :-1])
    if penalty == "L2":
        dh = dh * dh
        dw = dw * dw
    if reduction == "mean":
        return (jnp.mean(dh) + jnp.mean(dw)) / 2
    return jnp.sum(dh) + jnp.sum(dw)


if __name__ == "__main__":
    key = jax.random.PRNGKey(0)
    k0, k1, k2, k3, k4 = jax.random.split(key, 5)

    failures = []

    def check(name, x, penalty, reduction, rtol=1e-5, atol=1e-5, **kw):
        out = jax.block_until_ready(
            gradient_loss_2d(x, penalty=penalty, reduction=reduction, **kw))
        ref = jax.block_until_ready(_reference(x, penalty, reduction))
        if not jnp.allclose(out, ref, rtol=rtol, atol=atol):
            failures.append(
                f"{name} penalty={penalty} reduction={reduction}: {out} vs {ref}")

    # Primary shape from the spec (lane-dense flat path, single block).
    x0 = jax.random.normal(k0, (2, 4, 16, 16), dtype=jnp.float32)
    check("x0", x0, "L1", "mean")
    check("x0", x0, "L2", "sum", rtol=1e-4, atol=1e-4)

    # Flat path with several blocks + remainder planes (small blocks forced).
    x1 = jax.random.normal(k1, (5, 5, 16, 16), dtype=jnp.float32)
    check("x1", x1, "L1", "mean", target_block_bytes=8 * 1024)

    # bf16 stays bf16 through the DMA; cast to f32 happens in VMEM.
    x2 = jax.random.normal(k2, (2, 4, 16, 16),
                           dtype=jnp.float32).astype(jnp.bfloat16)
    check("x2", x2, "L1", "mean", rtol=2e-3, atol=2e-3)

    # H*W not a multiple of 128 -> tiled (planes, H, W) path, single tile.
    x3 = jax.random.normal(k3, (2, 3, 8, 12), dtype=jnp.float32)
    check("x3", x3, "L1", "mean")
    check("x3", x3, "L2", "sum", rtol=1e-4, atol=1e-4)

    # Tiled path with intra-plane H tiling: seam correction + padded H rows.
    x4 = jax.random.normal(k4, (1, 2, 20, 12), dtype=jnp.float32)
    check("x4", x4, "L1", "sum", rtol=1e-4, atol=1e-4,
          target_block_bytes=8 * 1024)

    if failures:
        for f in failures:
            print("MISMATCH", f)
    else:
        print("KERNEL_OK")
</pallas_src>

<mosaic_0001>
module attributes {stable_mosaic.version = 11 : i64} {
  func.func @_grad_loss_flat_kernel(%arg0: i32, %arg1: i32, %arg2: memref<8x256xf32, #tpu.memory_space<vmem>>, %arg3: memref<1x1xf32, #tpu.memory_space<smem>>, %arg4: memref<1x1xf32, #tpu.memory_space<smem>>, %arg5: memref<2x256xf32, #tpu.memory_space<vmem>>) attributes {dimension_semantics = [#tpu.dimension_semantics<arbitrary>, #tpu.dimension_semantics<arbitrary>], iteration_bounds = array<i64: 1, 1>, scalar_prefetch = 0 : i64, scratch_operands = 1 : i64, tpu.core_type = #tpu.core_type<tc>, window_params = [{transform_indices = @transform_0, window_bounds = array<i64: 8, 256>}, {transform_indices = @transform_1, window_bounds = array<i64: 1, 1>}, {transform_indices = @transform_2, window_bounds = array<i64: 1, 1>}]} {
    %c0_i32 = arith.constant 0 : i32
    %0 = arith.cmpi eq, %arg1, %c0_i32 : i32
    %1 = arith.extui %0 : i1 to i32
    %c0_i32_0 = arith.constant 0 : i32
    %2 = arith.cmpi ne, %1, %c0_i32_0 : i32
    scf.if %2 {
      %cst_14 = arith.constant 0.000000e+00 : f32
      %c0_15 = arith.constant 0 : index
      %c0_16 = arith.constant 0 : index
      %30 = memref.load %arg3[%c0_15, %c0_16] : memref<1x1xf32, #tpu.memory_space<smem>>
      memref.store %cst_14, %arg3[%c0_15, %c0_16] : memref<1x1xf32, #tpu.memory_space<smem>>
      %cst_17 = arith.constant 0.000000e+00 : f32
      %c0_18 = arith.constant 0 : index
      %c0_19 = arith.constant 0 : index
      %31 = memref.load %arg4[%c0_18, %c0_19] : memref<1x1xf32, #tpu.memory_space<smem>>
      memref.store %cst_17, %arg4[%c0_18, %c0_19] : memref<1x1xf32, #tpu.memory_space<smem>>
      %32 = tpu.iota {dimensions = array<i32: 1>} : vector<1x256xi32>
      %c15_i32 = arith.constant 15 : i32
      %33 = vector.broadcast %c15_i32 : i32 to vector<1x256xi32>
      %34 = arith.andi %32, %33 : vector<1x256xi32>
      %c16_i32_20 = arith.constant 16 : i32
      %35 = vector.broadcast %c16_i32_20 : i32 to vector<1x256xi32>
      %36 = arith.cmpi sge, %32, %35 : vector<1x256xi32>
      %37 = arith.extui %36 : vector<1x256xi1> to vector<1x256xi32>
      %38 = arith.sitofp %37 : vector<1x256xi32> to vector<1x256xf32>
      %c0_21 = arith.constant 0 : index
      %c0_22 = arith.constant 0 : index
      %39 = vector.load %arg5[%c0_21, %c0_22] : memref<2x256xf32, #tpu.memory_space<vmem>>, vector<1x256xf32>
      tpu.vector_store %arg5[%c0_21, %c0_22], %38 {strides = array<i32>} : memref<2x256xf32, #tpu.memory_space<vmem>>, vector<1x256xf32>,
      %c0_i32_23 = arith.constant 0 : i32
      %40 = vector.broadcast %c0_i32_23 : i32 to vector<1x256xi32>
      %41 = arith.cmpi ne, %34, %40 : vector<1x256xi32>
      %42 = arith.extui %41 : vector<1x256xi1> to vector<1x256xi32>
      %43 = arith.sitofp %42 : vector<1x256xi32> to vector<1x256xf32>
      %c1_24 = arith.constant 1 : index
      %c0_25 = arith.constant 0 : index
      %44 = vector.load %arg5[%c1_24, %c0_25] : memref<2x256xf32, #tpu.memory_space<vmem>>, vector<1x256xf32>
      tpu.vector_store %arg5[%c1_24, %c0_25], %43 {strides = array<i32>} : memref<2x256xf32, #tpu.memory_space<vmem>>, vector<1x256xf32>,
    } else {
    }
    %c0 = arith.constant 0 : index
    %c0_1 = arith.constant 0 : index
    %3 = vector.load %arg2[%c0, %c0_1] : memref<8x256xf32, #tpu.memory_space<vmem>>, vector<8x256xf32>
    %c0_2 = arith.constant 0 : index
    %c0_3 = arith.constant 0 : index
    %4 = vector.load %arg5[%c0_2, %c0_3] : memref<2x256xf32, #tpu.memory_space<vmem>>, vector<1x256xf32>
    %c1 = arith.constant 1 : index
    %c0_4 = arith.constant 0 : index
    %5 = vector.load %arg5[%c1, %c0_4] : memref<2x256xf32, #tpu.memory_space<vmem>>, vector<1x256xf32>
    %c16_i32 = arith.constant 16 : i32
    %6 = tpu.dynamic_rotate %3 by %c16_i32 dim 1 : vector<8x256xf32>, i32 -> vector<8x256xf32>
    %7 = arith.subf %3, %6 : vector<8x256xf32>
    %8 = vector.broadcast %4 : vector<1x256xf32> to vector<8x256xf32>
    %9 = arith.mulf %7, %8 : vector<8x256xf32>
    %c1_i32 = arith.constant 1 : i32
    %10 = tpu.dynamic_rotate %3 by %c1_i32 dim 1 : vector<8x256xf32>, i32 -> vector<8x256xf32>
    %11 = arith.subf %3, %10 : vector<8x256xf32>
    %12 = vector.broadcast %5 : vector<1x256xf32> to vector<8x256xf32>
    %13 = arith.mulf %11, %12 : vector<8x256xf32>
    %14 = math.absf %9 : vector<8x256xf32>
    %15 = math.absf %13 : vector<8x256xf32>
    %c0_5 = arith.constant 0 : index
    %c0_6 = arith.constant 0 : index
    %16 = memref.load %arg3[%c0_5, %c0_6] : memref<1x1xf32, #tpu.memory_space<smem>>
    %17 = vector.shape_cast %14 : vector<8x256xf32> to vector<1x8x256xf32>
    %cst = arith.constant dense<0.000000e+00> : vector<1xf32>
    %18 = vector.multi_reduction <add>, %17, %cst [1, 2] : vector<1x8x256xf32> to vector<1xf32>
    %19 = vector.shape_cast %18 : vector<1xf32> to vector<1x1x1xf32>
    %20 = vector.extract %19[0, 0, 0] : f32 from vector<1x1x1xf32>
    %21 = arith.addf %16, %20 : f32
    %c0_7 = arith.constant 0 : index
    %c0_8 = arith.constant 0 : index
    %22 = memref.load %arg3[%c0_7, %c0_8] : memref<1x1xf32, #tpu.memory_space<smem>>
    memref.store %21, %arg3[%c0_7, %c0_8] : memref<1x1xf32, #tpu.memory_space<smem>>
    %c0_9 = arith.constant 0 : index
    %c0_10 = arith.constant 0 : index
    %23 = memref.load %arg4[%c0_9, %c0_10] : memref<1x1xf32, #tpu.memory_space<smem>>
    %24 = vector.shape_cast %15 : vector<8x256xf32> to vector<1x8x256xf32>
    %cst_11 = arith.constant dense<0.000000e+00> : vector<1xf32>
    %25 = vector.multi_reduction <add>, %24, %cst_11 [1, 2] : vector<1x8x256xf32> to vector<1xf32>
    %26 = vector.shape_cast %25 : vector<1xf32> to vector<1x1x1xf32>
    %27 = vector.extract %26[0, 0, 0] : f32 from vector<1x1x1xf32>
    %28 = arith.addf %23, %27 : f32
    %c0_12 = arith.constant 0 : index
    %c0_13 = arith.constant 0 : index
    %29 = memref.load %arg4[%c0_12, %c0_13] : memref<1x1xf32, #tpu.memory_space<smem>>
    memref.store %28, %arg4[%c0_12, %c0_13] : memref<1x1xf32, #tpu.memory_space<smem>>
    return
  }
  func.func @transform_0(%arg0: i32, %arg1: i32) -> (i32, i32) {
    %c1_i32 = arith.constant 1 : i32
    %0 = arith.muli %arg0, %c1_i32 : i32
    %1 = arith.addi %0, %arg1 : i32
    %c0_i32 = arith.constant 0 : i32
    %c0_i32_0 = arith.constant 0 : i32
    return %1, %c0_i32 : i32, i32
  }
  func.func @transform_1(%arg0: i32, %arg1: i32) -> (i32, i32) {
    %c0_i32 = arith.constant 0 : i32
    %c0_i32_0 = arith.constant 0 : i32
    return %arg0, %c0_i32 : i32, i32
  }
  func.func @transform_2(%arg0: i32, %arg1: i32) -> (i32, i32) {
    %c0_i32 = arith.constant 0 : i32
    %c0_i32_0 = arith.constant 0 : i32
    return %arg0, %c0_i32 : i32, i32
  }
}

</mosaic_0001>

<llo_original>
// kernel: tpu_custom_call.1
$region0: #{tpu_custom_call.1}
  #allocation0 [shape = 'u32[]', space=smem, size = 0x4, offset = 0x4, fixed_abs, tag = 'smem constant byte address 0x4 - core index']
  #allocation1 [shape = 'u32[144,128]{1,0:T(1,128)}', space=vmem, size = 0x12000, scoped, tag = 'internal scratch']
  #allocation2 [shape = 'f32[2,256]{1,0:T(2,128)}', space=vmem, size = 0x800, scoped, tag = 'scratch operand']
  %s0 = inlined_call_operand.hbm [shape: f32[8,256], index: 0, kind: input, shape index: {}]
  %s1 = inlined_call_operand.hbm [shape: f32[1,1], index: 1, kind: output, shape index: {0}]
  %s2 = inlined_call_operand.hbm [shape: f32[1,1], index: 2, kind: output, shape index: {1}]
  %3 = xla_tuple %s1, %s2
  %s4 = sld [smem:[#allocation0]]
  $region30: #{tpu_custom_call.1} parent=0
    _
  %s6 = ssub.s32 1, %s4
  %s7 = scalar_select 0, %s6, %s4
  $region1: #{tpu_custom_call.1} parent=0
    #allocation3 [shape = 'u8[8192]{0}', space=vmem, size = 0x2000, scoped, tag = 'input window, operand 0, single buffered']
    #allocation4 [shape = 's32[1]{0}', space=sflag, size = 0x4, scoped, tag = 'scoped memory for tpu_custom_call.1']
    #allocation5 [shape = 's32[1]{0}', space=sflag, size = 0x4, scoped, tag = 'scoped memory for tpu_custom_call.1']
    #allocation6 [shape = 'u8[512]{0}', space=smem, size = 0x200, scoped, tag = 'output window, operand 0, single buffered']
    #allocation7 [shape = 'u8[512]{0}', space=smem, size = 0x200, scoped, tag = 'output window, operand 1, single buffered']
    #allocation8 [shape = 's32[1]{0}', space=sflag, size = 0x4, scoped, tag = 'scoped memory for tpu_custom_call.1']
    %8 = vsyncpa [#allocation4], 0
    %9 = vsyncpa [#allocation5], 0
    %10 = vsyncpa [#allocation8], 0
    // Predicated region
    $region2: #{tpu_custom_call.1} parent=1 // pred_check
      _
    $region3: #{tpu_custom_call.1} parent=1 // pred_check_branch
      %12 = sbr.rel (0) target = $region5
    $region4: #{tpu_custom_call.1} parent=1 // pred_region
      %s13 = sadd.s32 0, 0
      %s15 = ssub.s32 256, 256
      %16 = vsyncadd [#allocation4], %s15
      %s17 = smul.addr %s13, 2
      %s18 = smul.addr %s17, 128
      %s19 = scalar_lea.hbm %s0, %s18
      %s21 = sshll.u32 [#allocation3], 4
      %s22 = int_to_ptr.vmem [resolvable:$true] %s21
      %24 = dma.hbm_to_vmem [thread:$0]  %s19, 256, %s22, [#allocation4]
    $region5: #{tpu_custom_call.1} parent=1 // pred_fallthru
      _
    // Predicated region
    $region6: #{tpu_custom_call.1} parent=1 // pred_check
      _
    $region7: #{tpu_custom_call.1} parent=1 // pred_check_branch
      %26 = sbr.rel (0) target = $region9
    $region8: #{tpu_custom_call.1} parent=1 // pred_region
      %27 = dma.done [#allocation4], 256
    $region9: #{tpu_custom_call.1} parent=1 // pred_fallthru
      _
    %s28 = sadd.s32 0, 0
    %p29 = scmp.eq.s32.totalorder 0, 0
    // Predicated region
    $region10: #{tpu_custom_call.1} parent=1 // pred_check
      %p30 = pneg %p29
    $region11: #{tpu_custom_call.1} parent=1 // pred_check_branch
      %32 = sbr.rel (%p30) target = $region13
    $region12: #{tpu_custom_call.1} parent=1 // pred_region
      %s33 = scalar_lea.smem [#allocation6], 0
      %34 = sst [smem:[%s33]] 0.0
      %s35 = scalar_lea.smem [#allocation7], 0
      %36 = sst [smem:[%s35]] 0.0
      %v37 = vlaneseq
      %v38 = vand.u32 %v37, 127
      %v39 = vadd.s32 %v38, 128
      %v40 = vand.u32 %v38, 15
      %v41 = vand.u32 %v39, 15
      %vm42 = vcmp.ge.s32.totalorder %v38, 16
      %vm43 = vcmp.ge.s32.totalorder %v39, 16
      %v44 = vsel %vm42, 1, 0
      %v45 = vsel %vm43, 1, 0
      %v46 = vcvt.s32.f32 %v44
      %v47 = vcvt.s32.f32 %v45
      %v50 = vcombine.low %v46, %v47
      %v52 = vunpack.c.l.s4 1966171168
      %v53 = vunpack.c.0.s8 %v52
      %v54 = vlaneseq
      %v55 = vshrl.u32 %v54, 7
      %v56 = vsub.s32 %v53, %v55
      %v57 = vrot.slane %v50, %v56
      %v59 = vunpack.c.l.s4 1966171168
      %v60 = vunpack.c.0.s8 %v59
      %v61 = vlaneseq
      %v62 = vshrl.u32 %v61, 7
      %v63 = vsub.s32 %v60, %v62
      %v64 = vrot.slane %v57, %v63
      %v66 = vlaneseq
      %vm67 = vcmp.ge.s32.totalorder %v66, 0
      %vm68 = vcmp.lt.s32.totalorder %v66, 256
      %vm69 = vmand %vm67, %vm68
      %70 = vst.msk [vmem:[#allocation2] ss:$2 sm:$0x3] %vm69, %v64
      %vm71 = vcmp.ne.s32.totalorder %v40, 0
      %vm72 = vcmp.ne.s32.totalorder %v41, 0
      %v73 = vsel %vm71, 1, 0
      %v74 = vsel %vm72, 1, 0
      %v75 = vcvt.s32.f32 %v73
      %v76 = vcvt.s32.f32 %v74
      %v79 = vcombine.low %v75, %v76
      %v81 = vunpack.c.l.s4 1966171168
      %v82 = vunpack.c.0.s8 %v81
      %v83 = vlaneseq
      %v84 = vshrl.u32 %v83, 7
      %v85 = vsub.s32 %v82, %v84
      %v86 = vrot.slane %v79, %v85
      %v88 = vunpack.c.l.s4 1966171168
      %v89 = vunpack.c.0.s8 %v88
      %v90 = vlaneseq
      %v91 = vshrl.u32 %v90, 7
      %v92 = vsub.s32 %v89, %v91
      %v93 = vrot.slane %v86, %v92
      %s95 = scalar_lea.vmem [#allocation2], 1
      %96 = vst.msk [vmem:[%s95] ss:$2 sm:$0x3] %vm69, %v93
    $region13: #{tpu_custom_call.1} parent=1 // pred_fallthru
      _
    %v97 = vld [vmem:[#allocation3] sm:$0xff]
    %v98 = vld [vmem:[#allocation3 + $0x8] sm:$0xff]
    %v99 = vld [vmem:[#allocation2] ss:$2 sm:$0x3]
    %s100 = scalar_lea.vmem [#allocation2], 1
    %v101 = vld [vmem:[%s100] ss:$2 sm:$0x3]
    %102 = vrot.lane.b32.xlu0 %v97, 16
    %v103 = vpop.permute.xlu0 %102
    %104 = vrot.lane.b32.xlu0 %v98, 16
    %v105 = vpop.permute.xlu0 %104
    %v106 = vlaneseq
    %v107 = vand.u32 %v106, 127
    %vm108 = vcmp.lt.s32.totalorder %v107, 16
    %v109 = vsel %vm108, %v103, %v105
    %v110 = vsel %vm108, %v105, %v103
    %v111 = vsub.f32 %v97, %v110
    %v112 = vsub.f32 %v98, %v109
    %v114 = vlaneseq
    %v115 = vshrl.u32 %v114, 7
    %v116 = vsub.s32 0, %v115
    %v117 = vrot.slane %v99, %v116
    %v118 = vlaneseq
    %v119 = vshrl.u32 %v118, 7
    %v120 = vsub.s32 1, %v119
    %v121 = vrot.slane %v99, %v120
    %v124 = vmul.f32 %v111, %v117
    %v125 = vmul.f32 %v112, %v121
    %126 = vrot.lane.b32.xlu0 %v97, 1
    %v127 = vpop.permute.xlu0 %126
    %128 = vrot.lane.b32.xlu0 %v98, 1
    %v129 = vpop.permute.xlu0 %128
    %vm130 = vcmp.lt.s32.totalorder %v107, 1
    %v131 = vsel %vm130, %v127, %v129
    %v132 = vsel %vm130, %v129, %v127
    %v133 = vsub.f32 %v97, %v132
    %v134 = vsub.f32 %v98, %v131
    %v136 = vlaneseq
    %v137 = vshrl.u32 %v136, 7
    %v138 = vsub.s32 0, %v137
    %v139 = vrot.slane %v101, %v138
    %v140 = vlaneseq
    %v141 = vshrl.u32 %v140, 7
    %v142 = vsub.s32 1, %v141
    %v143 = vrot.slane %v101, %v142
    %v146 = vmul.f32 %v133, %v139
    %v147 = vmul.f32 %v134, %v143
    %v148 = vand.u32 2147483647, %v124
    %v149 = vand.u32 2147483647, %v125
    %v150 = vand.u32 2147483647, %v146
    %v151 = vand.u32 2147483647, %v147
    %s152 = sld [smem:[#allocation6]]
    %v153 = vadd.f32 %v148, %v149
    %154 = vadd.xlane.f32.xlu0 %v153
    %v155 = vpop.xlane.xlu0 %154
    %v156 = vrot.slane %v155, 4
    %v157 = vadd.f32 %v155, %v156
    %v158 = vrot.slane %v157, 2
    %v159 = vadd.f32 %v157, %v158
    %v160 = vrot.slane %v159, 1
    %v161 = vadd.f32 %v159, %v160
    %s162 = vtos %v161
    %s163 = sadd.f32 %s152, %s162
    %s164 = scalar_lea.smem [#allocation6], 0
    %165 = sst [smem:[%s164]] %s163
    %s166 = sld [smem:[#allocation7]]
    %v167 = vadd.f32 %v150, %v151
    %168 = vadd.xlane.f32.xlu0 %v167
    %v169 = vpop.xlane.xlu0 %168
    %v170 = vrot.slane %v169, 4
    %v171 = vadd.f32 %v169, %v170
    %v172 = vrot.slane %v171, 2
    %v173 = vadd.f32 %v171, %v172
    %v174 = vrot.slane %v173, 1
    %v175 = vadd.f32 %v173, %v174
    %s176 = vtos %v175
    %s177 = sadd.f32 %s166, %s176
    %s178 = scalar_lea.smem [#allocation7], 0
    %179 = sst [smem:[%s178]] %s177
    // Predicated region
    $region14: #{tpu_custom_call.1} parent=1 // pred_check
      _
    $region15: #{tpu_custom_call.1} parent=1 // pred_check_branch
      %181 = sbr.rel (0) target = $region17
    $region16: #{tpu_custom_call.1} parent=1 // pred_region
      %s183 = ssub.s32 16, 16
      %184 = vsyncadd [#allocation5], %s183
      %187 = dma.smem_to_hbm [#allocation6], 16, %s1, [#allocation5]
    $region17: #{tpu_custom_call.1} parent=1 // pred_fallthru
      _
    // Predicated region
    $region18: #{tpu_custom_call.1} parent=1 // pred_check
      _
    $region19: #{tpu_custom_call.1} parent=1 // pred_check_branch
      %189 = sbr.rel (0) target = $region21
    $region20: #{tpu_custom_call.1} parent=1 // pred_region
      %s191 = ssub.s32 16, 16
      %192 = vsyncadd [#allocation8], %s191
      %195 = dma.smem_to_hbm [#allocation7], 16, %s2, [#allocation8]
    $region21: #{tpu_custom_call.1} parent=1 // pred_fallthru
      _
    // Predicated region
    $region22: #{tpu_custom_call.1} parent=1 // pred_check
      _
    $region23: #{tpu_custom_call.1} parent=1 // pred_check_branch
      %197 = sbr.rel (0) target = $region25
    $region24: #{tpu_custom_call.1} parent=1 // pred_region
      %198 = dma.done [#allocation5], 16
    $region25: #{tpu_custom_call.1} parent=1 // pred_fallthru
      _
    // Predicated region
    $region26: #{tpu_custom_call.1} parent=1 // pred_check
      _
    $region27: #{tpu_custom_call.1} parent=1 // pred_check_branch
      %200 = sbr.rel (0) target = $region29
    $region28: #{tpu_custom_call.1} parent=1 // pred_region
      %201 = dma.done [#allocation8], 16
    $region29: #{tpu_custom_call.1} parent=1 // pred_fallthru
      _
    %202 = sfence
    %203 = vsyncpa [#allocation4], 1
    %204 = vsyncpa [#allocation5], 1
    %205 = vsyncpa [#allocation8], 1

</llo_original>
